<compile_context>
chip_gen: v7x
topology: tpu7x:2x2x1
jax: 0.10.0
libtpu: 0.0.40
codegen_flags: <defaults>
</compile_context>

<pallas_src>
import functools

import jax
import jax.numpy as jnp
from jax.experimental import pallas as pl
from jax.experimental.pallas import tpu as pltpu


# ---------------------------------------------------------------------------
# Kernels
# ---------------------------------------------------------------------------

def _blend_kernel(img_ref, inv_ref, pm_ref, op_ref):
    """op = img * inv_mask + patch * mask, one dense assignment per block.

    inv_ref / pm_ref carry a leading dim of 1 and broadcast over the fused batch
    dimension of the img/out block (no per-batch unroll)."""
    op_ref[...] = img_ref[...] * inv_ref[...] + pm_ref[...]


def _bbox_kernel(pm0_ref, idx_ref, mn_ref, mx_ref, *, H, W, row_tile):
    """First/last row-major nonzero of (patch*mask)[0] (torch .nonzero order)
    -> mask_idx = [xmin, ymin, xmax, ymax].  Tiled over row blocks with running
    min/max scratch so large images never need a full-HW VMEM block."""
    r = pl.program_id(0)
    HW = H * W

    @pl.when(r == 0)
    def _init():
        mn_ref[...] = jnp.full(mn_ref.shape, HW, jnp.int32)
        mx_ref[...] = jnp.full(mx_ref.shape, -1, jnp.int32)

    blk = pm0_ref[...]                                             # (row_tile, W) f32
    rows = jax.lax.broadcasted_iota(jnp.int32, blk.shape, 0) + r * row_tile
    cols = jax.lax.broadcasted_iota(jnp.int32, blk.shape, 1)
    flat = rows * W + cols
    nz = (blk != 0.0) & (rows < H)        # rows < H also masks the padded edge block
    lo = jnp.min(jnp.where(nz, flat, HW), axis=1, keepdims=True)
    lo = jnp.min(lo, axis=0, keepdims=True)                        # (1, 1)
    hi = jnp.max(jnp.where(nz, flat, -1), axis=1, keepdims=True)
    hi = jnp.max(hi, axis=0, keepdims=True)
    mn_ref[...] = jnp.minimum(mn_ref[...], lo)
    mx_ref[...] = jnp.maximum(mx_ref[...], hi)

    @pl.when(r == pl.num_programs(0) - 1)
    def _finalize():
        first = jnp.min(mn_ref[...])
        last = jnp.max(mx_ref[...])
        ymin = first // W
        xmin = first - ymin * W
        ymax = last // W
        xmax = last - ymax * W
        pos = jax.lax.broadcasted_iota(jnp.int32, idx_ref.shape, 1)   # (1, 4)
        # torch ordering: [xmin, ymin, xmax, ymax]
        vals = jnp.where(pos == 0, xmin,
               jnp.where(pos == 1, ymin,
               jnp.where(pos == 2, xmax, ymax)))
        idx_ref[...] = vals.astype(idx_ref.dtype)


# ---------------------------------------------------------------------------
# Tiling helpers
# ---------------------------------------------------------------------------

def _vmem_budget():
    """(target block bytes, scoped VMEM limit), tuned per TPU generation.

    v5e/v6e (128 MiB physical VMEM) get ~8 MiB blocks; the default is v7x-safe
    (64 MiB physical) with ~4 MiB blocks.  In both cases 2x(img)+2x(out)+
    2x(pm)+2x(inv) double-buffered blocks stay well under the limit."""
    try:
        cap = getattr(pltpu.get_tpu_info(), "vmem_capacity_bytes", None)
    except Exception:  # pragma: no cover - hardware query is best-effort
        cap = None
    if cap is not None and cap >= (96 << 20):
        return 8 << 20, 80 << 20
    return 4 << 20, 48 << 20


def _divisor_tile(total, want):
    """Largest divisor of `total` that is <= max(1, want)."""
    t = max(1, min(total, int(want)))
    while total % t:
        t -= 1
    return t


# ---------------------------------------------------------------------------
# Blend wrappers (HBM-bound hot path)
# ---------------------------------------------------------------------------

def _blend_full(img, inv_f, pm_f):
    """Dense lane-folded blend over the whole image.  img: (B, C, H, W)."""
    B, C, H, W = img.shape
    N = C * H * W
    itemsize = jnp.dtype(img.dtype).itemsize
    target, vmem_limit = _vmem_budget()

    # Preferred layout: (B, S, L) with L a multiple of 128 -> fully dense vregs
    # regardless of C or B.  Fallback to (B, N) if N is not a multiple of 128.
    L = next((c for c in (512, 256, 128) if N % c == 0), 0)
    if L:
        S = N // L
        per_batch = S * L * itemsize
        if per_batch >= target:
            batch_tile = 1
            s_tile = min(S, max(8, (target // (L * itemsize)) // 8 * 8))
        else:
            s_tile = S
            batch_tile = _divisor_tile(B, target // max(per_batch, 1))
        n_s = pl.cdiv(S, s_tile)
        n_b = B // batch_tile
        if n_s * n_b < 2:                      # give both v7x TensorCores work
            if B >= 2:
                batch_tile = _divisor_tile(B, (B + 1) // 2)
                n_b = B // batch_tile
            elif S >= 16:
                s_tile = max(8, (S // 2) // 8 * 8)
                n_s = pl.cdiv(S, s_tile)

        x = img.reshape(B, S, L)
        inv = inv_f.reshape(1, S, L)
        pm = pm_f.reshape(1, S, L)
        out = pl.pallas_call(
            _blend_kernel,
            grid=(n_s, n_b),                   # batch innermost: pm/inv stay resident
            in_specs=[
                pl.BlockSpec((batch_tile, s_tile, L), lambda s, b: (b, s, 0)),
                pl.BlockSpec((1, s_tile, L), lambda s, b: (0, s, 0)),
                pl.BlockSpec((1, s_tile, L), lambda s, b: (0, s, 0)),
            ],
            out_specs=pl.BlockSpec((batch_tile, s_tile, L), lambda s, b: (b, s, 0)),
            out_shape=jax.ShapeDtypeStruct((B, S, L), img.dtype),
            compiler_params=pltpu.CompilerParams(
                dimension_semantics=("parallel", "parallel"),
                vmem_limit_bytes=vmem_limit),
        )(x, inv, pm)
        return out.reshape(B, C, H, W)

    # 2-D fallback (N not a multiple of 128): full-batch blocks, lane-tiled, with
    # a cdiv grid (padded edge block) instead of one huge full-N block.
    if N < 128:
        n_tile = N
    else:
        n_tile = min(max(128, ((target // (B * itemsize)) // 128) * 128),
                     (N // 128) * 128)
    x = img.reshape(B, N)
    inv = inv_f.reshape(1, N)
    pm = pm_f.reshape(1, N)
    out = pl.pallas_call(
        _blend_kernel,
        grid=(pl.cdiv(N, n_tile),),
        in_specs=[
            pl.BlockSpec((B, n_tile), lambda n: (0, n)),
            pl.BlockSpec((1, n_tile), lambda n: (0, n)),
            pl.BlockSpec((1, n_tile), lambda n: (0, n)),
        ],
        out_specs=pl.BlockSpec((B, n_tile), lambda n: (0, n)),
        out_shape=jax.ShapeDtypeStruct((B, N), img.dtype),
        compiler_params=pltpu.CompilerParams(
            dimension_semantics=("parallel",),
            vmem_limit_bytes=vmem_limit),
    )(x, inv, pm)
    return out.reshape(B, C, H, W)


def _blend_band(img, inv_f, pm_f, band):
    """Blend restricted to the patch row band [band[0], band[1]).

    Rows outside the band already satisfy op == img (mask == 0 there), so img is
    aliased into the output and those rows are never read or written.  For the
    full HBM saving the caller should donate img (jax.jit(..., donate_argnums));
    without donation XLA inserts a protective copy (still correct)."""
    B, C, H, W = img.shape
    row_start = max(0, int(band[0]))
    row_end = min(H, int(band[1]))
    if row_end <= row_start:
        return img
    itemsize = jnp.dtype(img.dtype).itemsize
    target, vmem_limit = _vmem_budget()

    band_rows = row_end - row_start
    # Tight row tiling (multiple of 8) so we touch at most ~band_rows+14 rows,
    # then fuse batch to reach the per-block byte target.
    row_tile = 8
    per_block = C * row_tile * W * itemsize
    batch_tile = _divisor_tile(B, max(1, target // max(per_block, 1)))
    if batch_tile == B and B * per_block < target:
        # Batch fusion alone can't reach the target: grow row_tile, but never
        # beyond the (8-aligned) band height, so the band stays restricted.
        row_tile = min(max(8, pl.cdiv(band_rows, 8) * 8),
                       max(8, (target // max(C * W * itemsize * B, 1)) // 8 * 8))
        if row_tile >= H:
            row_tile = H
        per_block = C * row_tile * W * itemsize
        batch_tile = _divisor_tile(B, max(1, target // max(per_block, 1)))

    b0 = row_start // row_tile
    n_rows = pl.cdiv(row_end, row_tile) - b0
    n_b = B // batch_tile
    if n_rows * n_b < 2 and B >= 2:            # keep both v7x TensorCores busy
        batch_tile = _divisor_tile(B, (B + 1) // 2)
        n_b = B // batch_tile

    inv4 = inv_f.reshape(1, C, H, W)
    pm4 = pm_f.reshape(1, C, H, W)
    return pl.pallas_call(
        _blend_kernel,
        grid=(n_rows, n_b),                    # batch innermost: pm/inv stay resident
        in_specs=[
            pl.BlockSpec((batch_tile, C, row_tile, W), lambda h, b: (b, 0, b0 + h, 0)),
            pl.BlockSpec((1, C, row_tile, W), lambda h, b: (0, 0, b0 + h, 0)),
            pl.BlockSpec((1, C, row_tile, W), lambda h, b: (0, 0, b0 + h, 0)),
        ],
        out_specs=pl.BlockSpec((batch_tile, C, row_tile, W),
                               lambda h, b: (b, 0, b0 + h, 0)),
        out_shape=jax.ShapeDtypeStruct((B, C, H, W), img.dtype),
        input_output_aliases={0: 0},           # untouched rows keep img's values
        compiler_params=pltpu.CompilerParams(
            dimension_semantics=("parallel", "parallel"),
            vmem_limit_bytes=vmem_limit),
    )(img, inv4, pm4)


# ---------------------------------------------------------------------------
# Bounding box (runs once, off the hot path)
# ---------------------------------------------------------------------------

def _bbox_indices(pm0_f32, H, W):
    row_tile = H if H <= 512 else 512
    return pl.pallas_call(
        functools.partial(_bbox_kernel, H=H, W=W, row_tile=row_tile),
        grid=(pl.cdiv(H, row_tile),),
        in_specs=[pl.BlockSpec((row_tile, W), lambda r: (r, 0))],
        out_specs=pl.BlockSpec((1, 4), lambda r: (0, 0)),
        out_shape=jax.ShapeDtypeStruct((1, 4), jnp.float32),
        scratch_shapes=[pltpu.VMEM((1, 1), jnp.int32),
                        pltpu.VMEM((1, 1), jnp.int32)],
        compiler_params=pltpu.CompilerParams(dimension_semantics=("arbitrary",)),
    )(pm0_f32)


# ---------------------------------------------------------------------------
# Augmentation glue + forward
# ---------------------------------------------------------------------------

def _rot90_chw(x, k):
    return jnp.rot90(x, k=k, axes=(1, 2))


def _apply_rot90(x, rotation_idx):
    """90-degree rotation of a (C, H, W) tensor.  A traced rotation index goes
    through lax.switch over the 4 distinct rotations (k=4 == identity), avoiding
    a host sync and per-rotation recompiles; requires H == W in that case."""
    if isinstance(rotation_idx, int):
        return _rot90_chw(x, int(rotation_idx) % 4)
    if x.shape[1] != x.shape[2]:
        raise ValueError("traced rotation_idx requires a square patch (H == W)")
    idx = jnp.asarray(rotation_idx).reshape(()).astype(jnp.int32) % 4
    branches = [functools.partial(_rot90_chw, k=k) for k in range(4)]
    return jax.lax.switch(idx, branches, x)


def patch_attack_forward(img, patch, mask, rotation_idx, *, band=None):
    """PatchAttack.forward.

    img: (B, C, H, W); patch, mask: (C, H, W); rotation_idx: int or traced int32.
    band: optional (row_start, row_end) Python ints that cover every nonzero row
          of the mask (e.g. the statically known centered patch band).  When
          given, the blend only touches that row band and img is aliased into
          the output (donate img under jit for the full HBM saving)."""
    B, C, H, W = img.shape

    # Augmentation glue (off the hot path).
    # TODO(synk): RandomAffine (random translate/scale) has no clean deterministic
    #             Pallas equivalent; identity transform is used instead.
    patch_r = _apply_rot90(patch, rotation_idx)
    mask_r = _apply_rot90(mask, rotation_idx)

    # Resident blend operands, computed once.  The bbox uses the float32 product
    # so a bf16 img dtype cannot flush tiny patch*mask values to zero.
    pm_f32 = patch_r.astype(jnp.float32) * mask_r.astype(jnp.float32)
    pm_f = pm_f32.astype(img.dtype)
    inv_f = jnp.where(mask_r == 0, 1.0, 0.0).astype(img.dtype)

    if band is None:
        op = _blend_full(img, inv_f, pm_f)
    else:
        op = _blend_band(img, inv_f, pm_f, band)

    # TODO(synk): an all-zero mask yields sentinel indices here; the torch code
    #             would raise on idxs[0] instead.
    idx = _bbox_indices(pm_f32[0], H, W)
    mask_idx = jnp.ones((B, 4), jnp.float32) * idx    # matches torch: batch * mask_idx
    return op, mask_idx


def generate_mask(shape, patch_size):
    """Reproduces PatchAttack.__generate_mask for a (C, H, W) patch."""
    C, H, W = shape
    mask = jnp.ones(shape, dtype=jnp.float32)
    uppleft_x = W // 2 - patch_size // 2
    uppleft_y = H // 2 - patch_size // 2
    bottright_x = W // 2 + patch_size // 2
    bottright_y = H // 2 + patch_size // 2
    mask = mask.at[:, :uppleft_x, :].set(0.0)
    mask = mask.at[:, :, :uppleft_y].set(0.0)
    mask = mask.at[:, bottright_x:, :].set(0.0)
    mask = mask.at[:, :, bottright_y:].set(0.0)
    return mask


if __name__ == "__main__":
    key = jax.random.PRNGKey(0)
    k_img, k_patch, k_rot = jax.random.split(key, 3)

    B, C, H, W = 2, 4, 16, 16
    patch_size = 8

    img = jax.random.uniform(k_img, (B, C, H, W), dtype=jnp.float32)
    # Deterministic synthetic adversarial patch (same spatial size as the image).
    patch = jax.random.uniform(k_patch, (C, H, W), dtype=jnp.float32) + 0.1
    mask = generate_mask((C, H, W), patch_size)

    # Deterministic stand-in for torch.randint(0, 5, (1,)); stays on device and
    # goes through lax.switch (no host round-trip, no per-rotation recompile).
    rotation_idx = jax.random.randint(k_rot, (), 0, 5)

    # Full-image blend path.
    op, mask_idx = patch_attack_forward(img, patch, mask, rotation_idx)
    op = jax.block_until_ready(op)
    mask_idx = jax.block_until_ready(mask_idx)

    # Band-restricted blend path (the mask's nonzero rows are the statically
    # known centered patch band; the centered square band is rotation-invariant).
    r0 = H // 2 - patch_size // 2
    r1 = H // 2 + patch_size // 2
    op_band, mask_idx_band = patch_attack_forward(
        img, patch, mask, rotation_idx, band=(r0, r1))
    op_band = jax.block_until_ready(op_band)
    mask_idx_band = jax.block_until_ready(mask_idx_band)

    # Larger batch exercises the fused-batch blocks (leading-dim broadcast of the
    # resident patch/mask blocks inside the kernel).
    img8 = jax.random.uniform(jax.random.PRNGKey(1), (8, C, H, W), dtype=jnp.float32)
    op8, mask_idx8 = patch_attack_forward(img8, patch, mask, rotation_idx)
    op8 = jax.block_until_ready(op8)

    # Pure-JAX reference (uses the concrete rotation only for the check).
    k_static = int(jax.device_get(rotation_idx)) % 4
    patch_ref = jnp.rot90(patch, k=k_static, axes=(1, 2))
    mask_ref = jnp.rot90(mask, k=k_static, axes=(1, 2))
    inv_ref = jnp.where(mask_ref == 0, 1.0, 0.0)
    ref_op = img * inv_ref[None] + (patch_ref * mask_ref)[None]
    ref_op8 = img8 * inv_ref[None] + (patch_ref * mask_ref)[None]
    pm0 = (patch_ref * mask_ref)[0].reshape(-1)
    nzidx = jnp.nonzero(pm0 != 0.0, size=pm0.shape[0], fill_value=-1)[0]
    n_valid = jnp.sum(pm0 != 0.0)
    first, last = nzidx[0], nzidx[n_valid - 1]
    # PyTorch ordering: [xmin, ymin, xmax, ymax]
    ref_idx = jnp.stack([first % W, first // W, last % W, last // W]).astype(jnp.float32)

    assert op.shape == (B, C, H, W) and mask_idx.shape == (B, 4)
    assert jnp.allclose(op, ref_op, atol=1e-6)
    assert jnp.allclose(op_band, ref_op, atol=1e-6)
    assert jnp.allclose(op8, ref_op8, atol=1e-6)
    assert jnp.allclose(mask_idx, jnp.ones((B, 4), jnp.float32) * ref_idx)
    assert jnp.allclose(mask_idx_band, jnp.ones((B, 4), jnp.float32) * ref_idx)
    assert jnp.allclose(mask_idx8, jnp.ones((8, 4), jnp.float32) * ref_idx)

    print("KERNEL_OK")
</pallas_src>

<mosaic_0001>
module attributes {stable_mosaic.version = 11 : i64} {
  func.func @_blend_kernel(%arg0: i32, %arg1: i32, %arg2: memref<1x2x512xf32, #tpu.memory_space<vmem>>, %arg3: memref<1x2x512xf32, #tpu.memory_space<vmem>>, %arg4: memref<1x2x512xf32, #tpu.memory_space<vmem>>, %arg5: memref<1x2x512xf32, #tpu.memory_space<vmem>>) attributes {dimension_semantics = [#tpu.dimension_semantics<parallel>, #tpu.dimension_semantics<parallel>], iteration_bounds = array<i64: 1, 2>, scalar_prefetch = 0 : i64, scratch_operands = 0 : i64, tpu.core_type = #tpu.core_type<tc>, window_params = [{transform_indices = @transform_0, window_bounds = array<i64: 1, 2, 512>}, {transform_indices = @transform_1, window_bounds = array<i64: 1, 2, 512>}, {transform_indices = @transform_2, window_bounds = array<i64: 1, 2, 512>}, {transform_indices = @transform_3, window_bounds = array<i64: 1, 2, 512>}]} {
    %c0 = arith.constant 0 : index
    %c0_0 = arith.constant 0 : index
    %c0_1 = arith.constant 0 : index
    %0 = vector.load %arg2[%c0, %c0_0, %c0_1] : memref<1x2x512xf32, #tpu.memory_space<vmem>>, vector<1x2x512xf32>
    %c0_2 = arith.constant 0 : index
    %c0_3 = arith.constant 0 : index
    %c0_4 = arith.constant 0 : index
    %1 = vector.load %arg3[%c0_2, %c0_3, %c0_4] : memref<1x2x512xf32, #tpu.memory_space<vmem>>, vector<1x2x512xf32>
    %2 = arith.mulf %0, %1 : vector<1x2x512xf32>
    %c0_5 = arith.constant 0 : index
    %c0_6 = arith.constant 0 : index
    %c0_7 = arith.constant 0 : index
    %3 = vector.load %arg4[%c0_5, %c0_6, %c0_7] : memref<1x2x512xf32, #tpu.memory_space<vmem>>, vector<1x2x512xf32>
    %4 = arith.addf %2, %3 : vector<1x2x512xf32>
    %c0_8 = arith.constant 0 : index
    %c0_9 = arith.constant 0 : index
    %c0_10 = arith.constant 0 : index
    %5 = vector.load %arg5[%c0_8, %c0_9, %c0_10] : memref<1x2x512xf32, #tpu.memory_space<vmem>>, vector<1x2x512xf32>
    tpu.vector_store %arg5[%c0_8, %c0_9, %c0_10], %4 {strides = array<i32>} : memref<1x2x512xf32, #tpu.memory_space<vmem>>, vector<1x2x512xf32>,
    return
  }
  func.func @transform_0(%arg0: i32, %arg1: i32) -> (i32, i32, i32) {
    %c0_i32 = arith.constant 0 : i32
    %c0_i32_0 = arith.constant 0 : i32
    return %arg1, %arg0, %c0_i32 : i32, i32, i32
  }
  func.func @transform_1(%arg0: i32, %arg1: i32) -> (i32, i32, i32) {
    %c0_i32 = arith.constant 0 : i32
    %c0_i32_0 = arith.constant 0 : i32
    %c0_i32_1 = arith.constant 0 : i32
    return %c0_i32, %arg0, %c0_i32_0 : i32, i32, i32
  }
  func.func @transform_2(%arg0: i32, %arg1: i32) -> (i32, i32, i32) {
    %c0_i32 = arith.constant 0 : i32
    %c0_i32_0 = arith.constant 0 : i32
    %c0_i32_1 = arith.constant 0 : i32
    return %c0_i32, %arg0, %c0_i32_0 : i32, i32, i32
  }
  func.func @transform_3(%arg0: i32, %arg1: i32) -> (i32, i32, i32) {
    %c0_i32 = arith.constant 0 : i32
    %c0_i32_0 = arith.constant 0 : i32
    return %arg1, %arg0, %c0_i32 : i32, i32, i32
  }
}

</mosaic_0001>

<llo_original>
// kernel: tpu_custom_call.1
$region0: #{tpu_custom_call.1}
  #allocation0 [shape = 'u32[]', space=smem, size = 0x4, offset = 0x4, fixed_abs, tag = 'smem constant byte address 0x4 - core index']
  #allocation1 [shape = 'u32[144,128]{1,0:T(1,128)}', space=vmem, size = 0x12000, scoped, tag = 'internal scratch']
  %s0 = inlined_call_operand.hbm [shape: f32[2,2,512], index: 0, kind: input, shape index: {}]
  %s1 = inlined_call_operand.hbm [shape: f32[1,2,512], index: 1, kind: input, shape index: {}]
  %s2 = inlined_call_operand.hbm [shape: f32[1,2,512], index: 2, kind: input, shape index: {}]
  %s3 = inlined_call_operand.hbm [shape: f32[2,2,512], index: 3, kind: output, shape index: {}]
  %s4 = sld [smem:[#allocation0]]
  $region57: #{tpu_custom_call.1} parent=0
    _
  %s6 = ssub.s32 1, %s4
  %s7 = scalar_select 0, %s6, %s4
  $region1: #{tpu_custom_call.1} parent=0
    #allocation2 [shape = 'u8[8192]{0}', space=vmem, size = 0x2000, scoped, tag = 'input window, operand 0']
    #allocation3 [shape = 's32[2]{0}', space=sflag, size = 0x8, scoped, tag = 'scoped memory for tpu_custom_call.1']
    #allocation4 [shape = 's32[2]{0}', space=sflag, size = 0x8, scoped, tag = 'scoped memory for tpu_custom_call.1']
    #allocation5 [shape = 'u8[4096]{0}', space=vmem, size = 0x1000, scoped, tag = 'input window, operand 1, single buffered']
    #allocation6 [shape = 's32[1]{0}', space=sflag, size = 0x4, scoped, tag = 'scoped memory for tpu_custom_call.1']
    #allocation7 [shape = 'u8[4096]{0}', space=vmem, size = 0x1000, scoped, tag = 'input window, operand 2, single buffered']
    #allocation8 [shape = 'u8[8192]{0}', space=vmem, size = 0x2000, scoped, tag = 'output window, operand 0']
    %8 = vsyncpa [#allocation3], 0
    %s9 = scalar_lea.sflag [#allocation3], 1
    %10 = vsyncpa %s9, 0
    %11 = vsyncpa [#allocation6], 0
    %12 = vsyncpa [#allocation4], 0
    %s13 = scalar_lea.sflag [#allocation4], 1
    %14 = vsyncpa %s13, 0
    loop: start=0, step=1, limit=4
    $region2: #{tpu_custom_call.1} parent=1 // loop_pre_header
      _
    $region3: #{tpu_custom_call.1} parent=1 // loop_header
      %s16 = sphi 0, %s20
      %p17 = scmp.ge.s32.totalorder %s16, 4
      %s23 = sphi 0, %s35
      %s24 = sphi 0, %s31
      %s25 = sphi 0, %s23
      %s26 = sphi 0, %s24
      %s27 = sphi 0, %s25
      %s28 = sphi 0, %s26
      %s40 = sphi 0, %s42
      %s43 = sphi 0, %s40
      %s44 = sphi 0, %s43
      %s60 = sphi 0, %s44
      %s66 = sphi 0, %s68
      %s69 = sphi 0, %s66
      %s70 = sphi 0, %s69
      %s86 = sphi 0, %s70
      %s92 = sphi 0, %s94
      %s95 = sphi 0, %s92
      %s96 = sphi 0, %s95
      %s112 = sphi 0, %s96
      %s120 = sphi 0, %s122
      %s123 = sphi 0, %s120
      %s124 = sphi 0, %s123
      %s140 = sphi 0, %s124
    $region4: #{tpu_custom_call.1} parent=1 // loop_header_branch
      %19 = sbr.rel (%p17) target = $region8
    $region5: #{tpu_custom_call.1} parent=1 // loop_body
      %s21 = ssub.s32 %s16, 1
      %s22 = ssub.s32 %s16, 2
      %s29 = sadd.s32 1, %s24
      %p30 = scmp.ge.s32.totalorder %s29, 2
      %s31 = scalar_select %p30, 0, %s29
      %s32 = sadd.s32 1, %s23
      %s33 = scalar_select %p30, %s32, %s23
      %p34 = scmp.ge.s32.totalorder %s33, 1
      %s35 = scalar_select %p34, 0, %s33
      %s36 = ssub.s32 %s24, %s31
      %s37 = ssub.s32 %s23, %s35
      %s38 = sor.u32 %s36, %s37
      %p39 = scmp.eq.s32.totalorder %s38, 0
      %s41 = sadd.s32 %s40, 1
      %s42 = scalar_select %p39, %s40, %s41
      %p45 = pneg %p39
      %p46 = scmp.eq.s32.totalorder %s16, 1
      %p47 = por %p45, %p46
      %p48 = scmp.ne.s32.totalorder %s40, %s43
      %p49 = scmp.eq.s32.totalorder %s16, 0
      %p50 = por %p48, %p49
      %p51 = scmp.ne.s32.totalorder %s40, %s43
      %p52 = scmp.eq.s32.totalorder %s21, 1
      %p53 = por %p51, %p52
      %p54 = scmp.ne.s32.totalorder %s43, %s44
      %p55 = scmp.eq.s32.totalorder %s21, 0
      %p56 = por %p54, %p55
      %p57 = scmp.ne.s32.totalorder %s43, %s44
      %p58 = scmp.eq.s32.totalorder %s22, 1
      %p59 = por %p57, %p58
      %p61 = scmp.ne.s32.totalorder %s44, %s60
      %p62 = scmp.eq.s32.totalorder %s22, 0
      %p63 = por %p61, %p62
      %s64 = ssub.s32 %s23, %s35
      %p65 = scmp.eq.s32.totalorder %s64, 0
      %s67 = sadd.s32 %s66, 1
      %s68 = scalar_select %p65, %s66, %s67
      %p71 = pneg %p65
      %p72 = scmp.eq.s32.totalorder %s16, 1
      %p73 = por %p71, %p72
      %p74 = scmp.ne.s32.totalorder %s66, %s69
      %p75 = scmp.eq.s32.totalorder %s16, 0
      %p76 = por %p74, %p75
      %p77 = scmp.ne.s32.totalorder %s66, %s69
      %p78 = scmp.eq.s32.totalorder %s21, 1
      %p79 = por %p77, %p78
      %p80 = scmp.ne.s32.totalorder %s69, %s70
      %p81 = scmp.eq.s32.totalorder %s21, 0
      %p82 = por %p80, %p81
      %p83 = scmp.ne.s32.totalorder %s69, %s70
      %p84 = scmp.eq.s32.totalorder %s22, 1
      %p85 = por %p83, %p84
      %p87 = scmp.ne.s32.totalorder %s70, %s86
      %p88 = scmp.eq.s32.totalorder %s22, 0
      %p89 = por %p87, %p88
      %s90 = ssub.s32 %s23, %s35
      %p91 = scmp.eq.s32.totalorder %s90, 0
      %s93 = sadd.s32 %s92, 1
      %s94 = scalar_select %p91, %s92, %s93
      %p97 = pneg %p91
      %p98 = scmp.eq.s32.totalorder %s16, 1
      %p99 = por %p97, %p98
      %p100 = scmp.ne.s32.totalorder %s92, %s95
      %p101 = scmp.eq.s32.totalorder %s16, 0
      %p102 = por %p100, %p101
      %p103 = scmp.ne.s32.totalorder %s92, %s95
      %p104 = scmp.eq.s32.totalorder %s21, 1
      %p105 = por %p103, %p104
      %p106 = scmp.ne.s32.totalorder %s95, %s96
      %p107 = scmp.eq.s32.totalorder %s21, 0
      %p108 = por %p106, %p107
      %p109 = scmp.ne.s32.totalorder %s95, %s96
      %p110 = scmp.eq.s32.totalorder %s22, 1
      %p111 = por %p109, %p110
      %p113 = scmp.ne.s32.totalorder %s96, %s112
      %p114 = scmp.eq.s32.totalorder %s22, 0
      %p115 = por %p113, %p114
      %s116 = ssub.s32 %s24, %s31
      %s117 = ssub.s32 %s23, %s35
      %s118 = sor.u32 %s116, %s117
      %p119 = scmp.eq.s32.totalorder %s118, 0
      %s121 = sadd.s32 %s120, 1
      %s122 = scalar_select %p119, %s120, %s121
      %p125 = pneg %p119
      %p126 = scmp.eq.s32.totalorder %s16, 1
      %p127 = por %p125, %p126
      %p128 = scmp.ne.s32.totalorder %s120, %s123
      %p129 = scmp.eq.s32.totalorder %s16, 0
      %p130 = por %p128, %p129
      %p131 = scmp.ne.s32.totalorder %s120, %s123
      %p132 = scmp.eq.s32.totalorder %s21, 1
      %p133 = por %p131, %p132
      %p134 = scmp.ne.s32.totalorder %s123, %s124
      %p135 = scmp.eq.s32.totalorder %s21, 0
      %p136 = por %p134, %p135
      %p137 = scmp.ne.s32.totalorder %s123, %s124
      %p138 = scmp.eq.s32.totalorder %s22, 1
      %p139 = por %p137, %p138
      %p141 = scmp.ne.s32.totalorder %s124, %s140
      %p142 = scmp.eq.s32.totalorder %s22, 0
      %p143 = por %p141, %p142
      %p144 = scmp.le.s32.totalorder 1, %s16
      %p145 = scmp.lt.s32.totalorder %s16, 3
      %p146 = pnand %p144, %p145
      %p147 = pneg %p146
      // Predicated region
      $region9: #{tpu_custom_call.1} parent=5 // pred_check
        _
      $region10: #{tpu_custom_call.1} parent=5 // pred_check_branch
        %149 = sbr.rel (%p146) target = $region12
      $region11: #{tpu_custom_call.1} parent=5 // pred_region
        %s150 = ssub.s32 %s16, 1
        // Predicated region
        $region13: #{tpu_custom_call.1} parent=11 // pred_check
          %p151 = pneg %p82
        $region14: #{tpu_custom_call.1} parent=11 // pred_check_branch
          %153 = sbr.rel (%p151) target = $region16
        $region15: #{tpu_custom_call.1} parent=11 // pred_region
          %s155 = ssub.s32 128, 128
          %156 = vsyncadd [#allocation6], %s155
          %s157 = smul.addr %s25, 4
          %s158 = smul.addr %s157, 32
          %s159 = scalar_lea.hbm %s1, %s158
          %s161 = sshll.u32 [#allocation5], 4
          %s162 = int_to_ptr.vmem [resolvable:$true] %s161
          %164 = dma.hbm_to_vmem [thread:$0]  %s159, 128, %s162, [#allocation6]
        $region16: #{tpu_custom_call.1} parent=11 // pred_fallthru
          _
        // Predicated region
        $region17: #{tpu_custom_call.1} parent=11 // pred_check
          %p165 = pneg %p108
        $region18: #{tpu_custom_call.1} parent=11 // pred_check_branch
          %167 = sbr.rel (%p165) target = $region20
        $region19: #{tpu_custom_call.1} parent=11 // pred_region
          %s169 = ssub.s32 128, 128
          %170 = vsyncadd [#allocation6], %s169
          %s171 = smul.addr %s25, 4
          %s172 = smul.addr %s171, 32
          %s173 = scalar_lea.hbm %s2, %s172
          %s175 = sshll.u32 [#allocation7], 4
          %s176 = int_to_ptr.vmem [resolvable:$true] %s175
          %178 = dma.hbm_to_vmem [thread:$0]  %s173, 128, %s176, [#allocation6]
        $region20: #{tpu_custom_call.1} parent=11 // pred_fallthru
          _
      $region12: #{tpu_custom_call.1} parent=5 // pred_fallthru
        _
      %p179 = scmp.lt.s32.totalorder %s16, 2
      // Predicated region
      $region21: #{tpu_custom_call.1} parent=5 // pred_check
        %p180 = pneg %p179
      $region22: #{tpu_custom_call.1} parent=5 // pred_check_branch
        %182 = sbr.rel (%p180) target = $region24
      $region23: #{tpu_custom_call.1} parent=5 // pred_region
        // Predicated region
        $region25: #{tpu_custom_call.1} parent=23 // pred_check
          %p183 = pneg %p50
        $region26: #{tpu_custom_call.1} parent=23 // pred_check_branch
          %185 = sbr.rel (%p183) target = $region28
        $region27: #{tpu_custom_call.1} parent=23 // pred_region
          %s186 = sand.u32 %s40, 1
          %s187 = scalar_lea.sflag [#allocation3], %s186
          %s188 = sand.u32 %s40, 1
          %s189 = smul.addr %s188, 8
          %s190 = scalar_lea.vmem [#allocation2], %s189
          %s192 = ssub.s32 128, 128
          %193 = vsyncadd %s187, %s192
          %s194 = smul.addr %s23, 4
          %s195 = smul.addr %s24, 4
          %s196 = sadd.s32 %s194, %s195
          %s197 = smul.addr %s196, 32
          %s198 = scalar_lea.hbm %s0, %s197
          %s200 = sshll.u32 %s190, 4
          %s201 = int_to_ptr.vmem [resolvable:$true] %s200
          %203 = dma.hbm_to_vmem [thread:$0]  %s198, 128, %s201, %s187
        $region28: #{tpu_custom_call.1} parent=23 // pred_fallthru
          _
      $region24: #{tpu_custom_call.1} parent=5 // pred_fallthru
        _
      %p204 = scmp.le.s32.totalorder 1, %s16
      %p205 = scmp.lt.s32.totalorder %s16, 3
      %p206 = pnand %p204, %p205
      %p207 = pneg %p206
      // Predicated region
      $region29: #{tpu_custom_call.1} parent=5 // pred_check
        _
      $region30: #{tpu_custom_call.1} parent=5 // pred_check_branch
        %209 = sbr.rel (%p206) target = $region32
      $region31: #{tpu_custom_call.1} parent=5 // pred_region
        %s210 = ssub.s32 %s16, 1
        %s211 = sand.u32 %s43, 1
        %s212 = scalar_lea.sflag [#allocation3], %s211
        %s213 = sand.u32 %s43, 1
        %s214 = smul.addr %s213, 8
        %s215 = scalar_lea.vmem [#allocation2], %s214
        // Predicated region
        $region33: #{tpu_custom_call.1} parent=31 // pred_check
          %p216 = pneg %p56
        $region34: #{tpu_custom_call.1} parent=31 // pred_check_branch
          %218 = sbr.rel (%p216) target = $region36
        $region35: #{tpu_custom_call.1} parent=31 // pred_region
          %219 = dma.done %s212, 128
        $region36: #{tpu_custom_call.1} parent=31 // pred_fallthru
          _
        // Predicated region
        $region37: #{tpu_custom_call.1} parent=31 // pred_check
          %p220 = pneg %p82
        $region38: #{tpu_custom_call.1} parent=31 // pred_check_branch
          %222 = sbr.rel (%p220) target = $region40
        $region39: #{tpu_custom_call.1} parent=31 // pred_region
          %223 = dma.done [#allocation6], 128
        $region40: #{tpu_custom_call.1} parent=31 // pred_fallthru
          _
        // Predicated region
        $region41: #{tpu_custom_call.1} parent=31 // pred_check
          %p224 = pneg %p108
        $region42: #{tpu_custom_call.1} parent=31 // pred_check_branch
          %226 = sbr.rel (%p224) target = $region44
        $region43: #{tpu_custom_call.1} parent=31 // pred_region
          %227 = dma.done [#allocation6], 128
        $region44: #{tpu_custom_call.1} parent=31 // pred_fallthru
          _
        %s228 = sand.u32 %s43, 1
        %s229 = scalar_lea.sflag [#allocation3], %s228
        %s230 = sand.u32 %s43, 1
        %s231 = smul.addr %s230, 8
        %s232 = scalar_lea.vmem [#allocation2], %s231
        %p233 = pneg %p56
        %p234 = pneg %p53
        %p235 = pneg %p82
        %p236 = pneg %p79
        %p237 = pneg %p108
        %p238 = pneg %p105
        %p239 = pneg %p136
        %p240 = pneg %p133
        %s241 = sand.u32 %s123, 1
        %s242 = scalar_lea.sflag [#allocation4], %s241
        %s243 = sand.u32 %s123, 1
        %s244 = smul.addr %s243, 8
        %s245 = scalar_lea.vmem [#allocation8], %s244
        %v246 = vld [vmem:[%s215] sm:$0xff]
        %v247 = vld [vmem:[#allocation5] sm:$0xff]
        %v248 = vmul.f32 %v246, %v247
        %v249 = vld [vmem:[#allocation7] sm:$0xff]
        %v250 = vadd.f32 %v248, %v249
        %251 = vst [vmem:[%s245] sm:$0xff] %v250
        %s252 = sand.u32 %s123, 1
        %s253 = scalar_lea.sflag [#allocation4], %s252
        %s254 = sand.u32 %s123, 1
        %s255 = smul.addr %s254, 8
        %s256 = scalar_lea.vmem [#allocation8], %s255
        // Predicated region
        $region45: #{tpu_custom_call.1} parent=31 // pred_check
          %p257 = pneg %p133
        $region46: #{tpu_custom_call.1} parent=31 // pred_check_branch
          %259 = sbr.rel (%p257) target = $region48
        $region47: #{tpu_custom_call.1} parent=31 // pred_region
          %s261 = ssub.s32 128, 128
          %262 = vsyncadd %s253, %s261
          %s263 = smul.addr %s25, 4
          %s264 = smul.addr %s26, 4
          %s265 = sadd.s32 %s263, %s264
          %s266 = smul.addr %s265, 32
          %s267 = scalar_lea.hbm %s3, %s266
          %s269 = sshll.u32 %s256, 4
          %s270 = int_to_ptr.vmem [resolvable:$true] %s269
          %272 = dma.vmem_to_hbm [thread:$0]  %s270, 128, %s267, %s253
        $region48: #{tpu_custom_call.1} parent=31 // pred_fallthru
          _
      $region32: #{tpu_custom_call.1} parent=5 // pred_fallthru
        _
      %p273 = scmp.le.s32.totalorder 2, %s16
      // Predicated region
      $region49: #{tpu_custom_call.1} parent=5 // pred_check
        %p274 = pneg %p273
      $region50: #{tpu_custom_call.1} parent=5 // pred_check_branch
        %276 = sbr.rel (%p274) target = $region52
      $region51: #{tpu_custom_call.1} parent=5 // pred_region
        %s277 = ssub.s32 %s16, 2
        // Predicated region
        $region53: #{tpu_custom_call.1} parent=51 // pred_check
          %p278 = pneg %p139
        $region54: #{tpu_custom_call.1} parent=51 // pred_check_branch
          %280 = sbr.rel (%p278) target = $region56
        $region55: #{tpu_custom_call.1} parent=51 // pred_region
          %s281 = sand.u32 %s124, 1
          %s282 = scalar_lea.sflag [#allocation4], %s281
          %s283 = sand.u32 %s124, 1
          %s284 = smul.addr %s283, 8
          %s285 = scalar_lea.vmem [#allocation8], %s284
          %286 = dma.done %s282, 128
        $region56: #{tpu_custom_call.1} parent=51 // pred_fallthru
          _
      $region52: #{tpu_custom_call.1} parent=5 // pred_fallthru
        _
    $region6: #{tpu_custom_call.1} parent=1 // loop_footer
      %s20 = sadd.s32 1, %s16
    $region7: #{tpu_custom_call.1} parent=1 // loop_footer_branch
      %15 = sbr.rel target = $region3
    $region8: #{tpu_custom_call.1} parent=1 // loop_exit
      _
    %287 = vsyncpa [#allocation3], 1
    %s288 = scalar_lea.sflag [#allocation3], 1
    %289 = vsyncpa %s288, 1
    %290 = vsyncpa [#allocation6], 1
    %291 = vsyncpa [#allocation4], 1
    %s292 = scalar_lea.sflag [#allocation4], 1
    %293 = vsyncpa %s292, 1

</llo_original>
